<compile_context>
chip_gen: v7x
topology: tpu7x:2x2x1
jax: 0.10.0
libtpu: 0.0.40
codegen_flags: <defaults>
</compile_context>

<pallas_src>
import functools
import math

import jax
import jax.numpy as jnp
from jax import lax
from jax.experimental import pallas as pl
from jax.experimental.pallas import tpu as pltpu


_NEG_INF = -1e30  # finite mask sentinel; masking + exp always stay in f32.


# -----------------------------------------------------------------------------
# Kernel 1: per-head Q/K/V projection  (B, S, D) -> 3 x (B, H, S, d_k)
# -----------------------------------------------------------------------------
def _qkv_proj_kernel(x_ref, wqt_ref, wkt_ref, wvt_ref, q_ref, k_ref, v_ref):
    h = pl.program_id(2)
    x = x_ref[0]                                            # (ts, D), compute dtype
    q_ref[0, 0] = jnp.dot(x, wqt_ref[h],
                          preferred_element_type=jnp.float32).astype(q_ref.dtype)
    k_ref[0, 0] = jnp.dot(x, wkt_ref[h],
                          preferred_element_type=jnp.float32).astype(k_ref.dtype)
    v_ref[0, 0] = jnp.dot(x, wvt_ref[h],
                          preferred_element_type=jnp.float32).astype(v_ref.dtype)


# -----------------------------------------------------------------------------
# Kernel 2: flash attention + fused output projection
# -----------------------------------------------------------------------------
def _flash_mhsa_kernel(qh_ref, kh_ref, vh_ref, wot_ref, o_ref,
                       m_scr, l_scr, acc_scr, out_acc,
                       *, tq: int, tk: int, approx_recip: bool):
    # Grid: (batch, q_block, head, kv_block)
    qi = pl.program_id(1)
    h = pl.program_id(2)
    ki = pl.program_id(3)
    nh = pl.num_programs(2)
    nk = pl.num_programs(3)

    q_start = qi * tq
    k_start = ki * tk

    # Zero the fused output-projection accumulator on the first step of this
    # (batch, q_block) output tile.
    @pl.when((h == 0) & (ki == 0))
    def _():
        out_acc[...] = jnp.zeros_like(out_acc)

    # Per-(q_block, head) flash-state init.
    @pl.when(ki == 0)
    def _():
        m_scr[...] = jnp.full_like(m_scr, _NEG_INF)
        l_scr[...] = jnp.zeros_like(l_scr)
        acc_scr[...] = jnp.zeros_like(acc_scr)

    def scores():
        # (tq, d_k) x (tk, d_k) -> (tq, tk), contracting on d_k (no k.T copy).
        # Q is pre-scaled by 1/sqrt(d_k) (folded into Wq in the wrapper).
        return lax.dot_general(qh_ref[0, 0], kh_ref[0, 0],
                               (((1,), (1,)), ((), ())),
                               preferred_element_type=jnp.float32)

    def online_update(s):
        v = vh_ref[0, 0]                                    # (tk, d_k)
        m_prev = m_scr[...]
        m_new = jnp.maximum(m_prev, jnp.max(s, axis=-1, keepdims=True))
        alpha = jnp.exp(m_prev - m_new)
        p = jnp.exp(s - m_new)                              # f32 softmax chain
        l_scr[...] = alpha * l_scr[...] + jnp.sum(p, axis=-1, keepdims=True)
        acc_scr[...] = alpha * acc_scr[...] + jnp.dot(
            p.astype(v.dtype), v, preferred_element_type=jnp.float32)
        m_scr[...] = m_new

    # Fully-visible block strictly below the causal diagonal: no mask work.
    @pl.when(k_start + tk - 1 <= q_start)
    def _():
        online_update(scores())

    # Diagonal-crossing block: apply the causal mask.
    @pl.when((k_start <= q_start + tq - 1) & (k_start + tk - 1 > q_start))
    def _():
        row = q_start + lax.broadcasted_iota(jnp.int32, (tq, tk), 0)
        col = k_start + lax.broadcasted_iota(jnp.int32, (tq, tk), 1)
        online_update(jnp.where(row >= col, scores(), _NEG_INF))

    # Per-head epilogue: normalize and fold this head's slice of the output
    # projection into the lane-dense (tq, D) f32 accumulator.
    # TODO(synk): on v5e the per-head (tq,d_k)@(d_k,D) contraction only half-fills
    #             the 128-deep MXU; fusing 2 heads per matmul would improve fill.
    @pl.when(ki == nk - 1)
    def _():
        if approx_recip:
            inv_l = pl.reciprocal(l_scr[...], approx=True)
        else:
            inv_l = 1.0 / l_scr[...]
        attn_h = (acc_scr[...] * inv_l).astype(wot_ref.dtype)       # (tq, d_k)
        out_acc[...] += jnp.dot(attn_h, wot_ref[h],
                                preferred_element_type=jnp.float32)  # (tq, D)

    # Single lane-dense store of the finished (tq, D) output tile.
    @pl.when((ki == nk - 1) & (h == nh - 1))
    def _():
        o_ref[0] = out_acc[...].astype(o_ref.dtype)


# -----------------------------------------------------------------------------
# Wrapper
# -----------------------------------------------------------------------------
def _vmem_cap_bytes():
    """Physical VMEM per TensorCore minus headroom (>= 8 MiB or 1/8)."""
    phys = 64 << 20
    try:
        info = pltpu.get_tpu_info()
        cap = int(getattr(info, "vmem_capacity_bytes", 0) or 0)
        if cap > 0:
            phys = cap
    except Exception:
        pass
    return phys - max(phys // 8, 8 << 20)


def multi_head_self_attention(x, wq, wk, wv, wo, *, num_heads: int,
                              block_q: int = 256, block_k: int = 256,
                              block_s: int = 256, compute_dtype=None):
    """x: (B, S, d_model); w*: (d_model, d_model) nn.Linear-style weights (out, in).

    Matches MultiHeadSelfAttention.forward with positional_embedding_layer=None.
    """
    B, S, D = x.shape
    assert D % num_heads == 0
    d_k = D // num_heads
    out_dtype = x.dtype
    if compute_dtype is None:
        compute_dtype = jnp.bfloat16          # bf16 MXU operands, f32 accumulation
    compute_dtype = jnp.dtype(compute_dtype)
    approx_recip = compute_dtype != jnp.dtype(jnp.float32)

    tq = min(block_q, S)
    tk = min(block_k, S)
    ts = min(block_s, S)
    for t in (tq, tk, ts):
        assert S % t == 0 and (t == S or t % 8 == 0), \
            "seq_len must be divisible by tile sizes (tiles multiple of 8)"
    nq, nk, ns = S // tq, S // tk, S // ts

    scale = 1.0 / math.sqrt(d_k)

    # nn.Linear: y = x @ W^T, W (out, in).  Per-head input-proj slab h is
    # W^T[:, h*d_k:(h+1)*d_k]  ->  stacked as (H, D, d_k).  Scale folded into Wq.
    def in_slab(w):
        return jnp.transpose(w.reshape(num_heads, d_k, D), (0, 2, 1))

    wqt = (in_slab(wq) * scale).astype(compute_dtype)                # (H, D, d_k)
    wkt = in_slab(wk).astype(compute_dtype)
    wvt = in_slab(wv).astype(compute_dtype)
    # Output projection: out = sum_h attn_h @ Wo^T[h*d_k:(h+1)*d_k, :]
    wot = wo.T.reshape(num_heads, d_k, D).astype(compute_dtype)      # (H, d_k, D)

    x_c = x.astype(compute_dtype)
    bp = compute_dtype.itemsize
    obp = jnp.dtype(out_dtype).itemsize
    cap = _vmem_cap_bytes()

    # ----------------- Kernel 1: Q/K/V projection -----------------
    qkv_shape = jax.ShapeDtypeStruct((B, num_heads, S, d_k), compute_dtype)
    est1 = (2 * bp * ts * D                     # X tile (double-buffered)
            + 3 * 2 * bp * num_heads * D * d_k  # resident weight slabs
            + 3 * 2 * bp * ts * d_k)            # output tiles
    vmem1 = int(min(max(2 * est1, 32 << 20), cap))

    qh, kh, vh = pl.pallas_call(
        _qkv_proj_kernel,
        out_shape=(qkv_shape, qkv_shape, qkv_shape),
        grid_spec=pltpu.PrefetchScalarGridSpec(
            num_scalar_prefetch=0,
            grid=(B, ns, num_heads),
            in_specs=[
                pl.BlockSpec((1, ts, D), lambda b, si, h: (b, si, 0)),           # X tile (reused across heads)
                pl.BlockSpec((num_heads, D, d_k), lambda b, si, h: (0, 0, 0)),   # Wq^T (resident)
                pl.BlockSpec((num_heads, D, d_k), lambda b, si, h: (0, 0, 0)),   # Wk^T (resident)
                pl.BlockSpec((num_heads, D, d_k), lambda b, si, h: (0, 0, 0)),   # Wv^T (resident)
            ],
            out_specs=[
                pl.BlockSpec((1, 1, ts, d_k), lambda b, si, h: (b, h, si, 0)),
                pl.BlockSpec((1, 1, ts, d_k), lambda b, si, h: (b, h, si, 0)),
                pl.BlockSpec((1, 1, ts, d_k), lambda b, si, h: (b, h, si, 0)),
            ]),
        compiler_params=pltpu.CompilerParams(
            dimension_semantics=("parallel", "parallel", "arbitrary"),
            vmem_limit_bytes=vmem1),
    )(x_c, wqt, wkt, wvt)

    # ----------------- Kernel 2: flash attention + fused output projection ---
    def kv_index(b, qi, h, ki):
        # Clamp above-diagonal kv blocks to the last needed block; Pallas elides
        # the DMA when the block index is unchanged between consecutive steps.
        last_needed = (qi * tq + tq - 1) // tk
        return (b, h, jnp.minimum(ki, last_needed), 0)

    est2 = (2 * bp * (tq * d_k + 2 * tk * d_k)   # Q/K/V tiles (double-buffered)
            + 2 * bp * num_heads * d_k * D       # resident Wo^T
            + 2 * obp * tq * D                   # output tile
            + 4 * (2 * tq + tq * d_k + tq * D))  # f32 scratch
    vmem2 = int(min(max(2 * est2, 32 << 20), cap))

    kernel = functools.partial(_flash_mhsa_kernel, tq=tq, tk=tk,
                               approx_recip=approx_recip)
    out = pl.pallas_call(
        kernel,
        out_shape=jax.ShapeDtypeStruct((B, S, D), out_dtype),
        grid_spec=pltpu.PrefetchScalarGridSpec(
            num_scalar_prefetch=0,
            grid=(B, nq, num_heads, nk),
            in_specs=[
                pl.BlockSpec((1, 1, tq, d_k), lambda b, qi, h, ki: (b, h, qi, 0)),  # Q tile
                pl.BlockSpec((1, 1, tk, d_k), kv_index),                             # K tile
                pl.BlockSpec((1, 1, tk, d_k), kv_index),                             # V tile
                pl.BlockSpec((num_heads, d_k, D), lambda b, qi, h, ki: (0, 0, 0)),   # Wo^T (resident)
            ],
            out_specs=pl.BlockSpec((1, tq, D), lambda b, qi, h, ki: (b, qi, 0)),
            scratch_shapes=[
                pltpu.VMEM((tq, 1), jnp.float32),     # running max m
                pltpu.VMEM((tq, 1), jnp.float32),     # running sum l
                pltpu.VMEM((tq, d_k), jnp.float32),   # per-head PV accumulator
                pltpu.VMEM((tq, D), jnp.float32),     # fused output-proj accumulator
            ]),
        compiler_params=pltpu.CompilerParams(
            dimension_semantics=("parallel", "parallel", "arbitrary", "arbitrary"),
            vmem_limit_bytes=vmem2),
    )(qh, kh, vh, wot)
    return out


def _reference(x, wq, wk, wv, wo, *, num_heads: int):
    """Pure-JAX reference mirroring the PyTorch module."""
    B, S, D = x.shape
    d_k = D // num_heads
    q = x @ wq.T
    k = x @ wk.T
    v = x @ wv.T

    def split(t):
        return t.reshape(B, S, num_heads, d_k).transpose(0, 2, 1, 3)   # (B,H,S,dk)

    qh, kh, vh = split(q), split(k), split(v)
    scores = jnp.einsum("bhqd,bhkd->bhqk", qh, kh) / math.sqrt(d_k)
    mask = jnp.tril(jnp.ones((S, S), dtype=bool))
    scores = jnp.where(mask, scores, -jnp.inf)
    p = jax.nn.softmax(scores, axis=-1)
    attn = jnp.einsum("bhqk,bhkd->bhqd", p, vh)
    attn = attn.transpose(0, 2, 1, 3).reshape(B, S, D)
    return attn @ wo.T


if __name__ == "__main__":
    # Small shapes, chosen so the flash tiling is exercised: 2 q-blocks x
    # 2 kv-blocks (including a clamped/skipped above-diagonal block) and
    # 2 sequence blocks in the projection kernel.
    B, S, d_model, num_heads = 2, 16, 32, 4

    key = jax.random.PRNGKey(0)
    kx, kq, kk, kv, ko = jax.random.split(key, 5)
    std = 1.0 / math.sqrt(d_model)
    x = jax.random.normal(kx, (B, S, d_model), dtype=jnp.float32)
    wq = jax.random.normal(kq, (d_model, d_model), dtype=jnp.float32) * std
    wk = jax.random.normal(kk, (d_model, d_model), dtype=jnp.float32) * std
    wv = jax.random.normal(kv, (d_model, d_model), dtype=jnp.float32) * std
    wo = jax.random.normal(ko, (d_model, d_model), dtype=jnp.float32) * std

    ref = _reference(x, wq, wk, wv, wo, num_heads=num_heads)

    # f32 MXU-operand path (exact reciprocal): tight check vs reference.
    out_f32 = multi_head_self_attention(x, wq, wk, wv, wo, num_heads=num_heads,
                                        block_q=8, block_k=8, block_s=8,
                                        compute_dtype=jnp.float32)
    out_f32 = jax.block_until_ready(out_f32)
    assert out_f32.shape == (B, S, d_model)
    assert jnp.allclose(out_f32, ref, atol=5e-3, rtol=5e-3), "f32 mismatch vs reference"

    # Default bf16 MXU-operand path (f32 accumulation); output stays in x.dtype.
    out_bf16 = multi_head_self_attention(x, wq, wk, wv, wo, num_heads=num_heads,
                                         block_q=8, block_k=8, block_s=8)
    out_bf16 = jax.block_until_ready(out_bf16)
    assert out_bf16.dtype == x.dtype
    assert bool(jnp.all(jnp.isfinite(out_bf16)))
    assert jnp.allclose(out_bf16, ref, atol=1e-1, rtol=1e-1), "bf16 mismatch vs reference"

    print("KERNEL_OK")
</pallas_src>

<mosaic_0001>
module attributes {stable_mosaic.version = 11 : i64} {
  func.func @_qkv_proj_kernel(%arg0: i32, %arg1: i32, %arg2: i32, %arg3: memref<1x8x32xf32, #tpu.memory_space<vmem>>, %arg4: memref<4x32x8xf32, #tpu.memory_space<vmem>>, %arg5: memref<4x32x8xf32, #tpu.memory_space<vmem>>, %arg6: memref<4x32x8xf32, #tpu.memory_space<vmem>>, %arg7: memref<1x1x8x8xf32, #tpu.memory_space<vmem>>, %arg8: memref<1x1x8x8xf32, #tpu.memory_space<vmem>>, %arg9: memref<1x1x8x8xf32, #tpu.memory_space<vmem>>) attributes {dimension_semantics = [#tpu.dimension_semantics<parallel>, #tpu.dimension_semantics<parallel>, #tpu.dimension_semantics<arbitrary>], iteration_bounds = array<i64: 2, 2, 4>, scalar_prefetch = 0 : i64, scratch_operands = 0 : i64, tpu.core_type = #tpu.core_type<tc>, window_params = [{transform_indices = @transform_0, window_bounds = array<i64: 1, 8, 32>}, {pipeline_mode = #tpu.pipeline_mode<synchronous>, transform_indices = @transform_1, window_bounds = array<i64: 4, 32, 8>}, {pipeline_mode = #tpu.pipeline_mode<synchronous>, transform_indices = @transform_2, window_bounds = array<i64: 4, 32, 8>}, {pipeline_mode = #tpu.pipeline_mode<synchronous>, transform_indices = @transform_3, window_bounds = array<i64: 4, 32, 8>}, {transform_indices = @transform_4, window_bounds = array<i64: 1, 1, 8, 8>}, {transform_indices = @transform_5, window_bounds = array<i64: 1, 1, 8, 8>}, {transform_indices = @transform_6, window_bounds = array<i64: 1, 1, 8, 8>}]} {
    %c0 = arith.constant 0 : index
    %c0_0 = arith.constant 0 : index
    %c0_1 = arith.constant 0 : index
    %0 = vector.load %arg3[%c0, %c0_0, %c0_1] : memref<1x8x32xf32, #tpu.memory_space<vmem>>, vector<1x8x32xf32>
    %1 = vector.shape_cast %0 : vector<1x8x32xf32> to vector<8x32xf32>
    %2 = arith.index_cast %arg2 : i32 to index
    %c0_2 = arith.constant 0 : index
    %c0_3 = arith.constant 0 : index
    %3 = vector.load %arg4[%2, %c0_2, %c0_3] : memref<4x32x8xf32, #tpu.memory_space<vmem>>, vector<1x32x8xf32>
    %4 = vector.shape_cast %3 : vector<1x32x8xf32> to vector<32x8xf32>
    %cst = arith.constant dense<0.000000e+00> : vector<8x8xf32>
    %5 = tpu.matmul %1, %4, %cst {dimension_numbers = #tpu.dot_dimension_numbers<[1], [0], [0], [1], [0, 0, 1, 1], [], []>} : vector<8x32xf32>, vector<32x8xf32>, vector<8x8xf32> -> vector<8x8xf32>
    %c0_4 = arith.constant 0 : index
    %c0_5 = arith.constant 0 : index
    %c0_6 = arith.constant 0 : index
    %c0_7 = arith.constant 0 : index
    %6 = vector.load %arg7[%c0_4, %c0_5, %c0_6, %c0_7] : memref<1x1x8x8xf32, #tpu.memory_space<vmem>>, vector<1x1x8x8xf32>
    %7 = vector.shape_cast %6 : vector<1x1x8x8xf32> to vector<8x8xf32>
    %8 = vector.shape_cast %5 : vector<8x8xf32> to vector<1x1x8x8xf32>
    tpu.vector_store %arg7[%c0_4, %c0_5, %c0_6, %c0_7], %8 {strides = array<i32>} : memref<1x1x8x8xf32, #tpu.memory_space<vmem>>, vector<1x1x8x8xf32>,
    %9 = arith.index_cast %arg2 : i32 to index
    %c0_8 = arith.constant 0 : index
    %c0_9 = arith.constant 0 : index
    %10 = vector.load %arg5[%9, %c0_8, %c0_9] : memref<4x32x8xf32, #tpu.memory_space<vmem>>, vector<1x32x8xf32>
    %11 = vector.shape_cast %10 : vector<1x32x8xf32> to vector<32x8xf32>
    %cst_10 = arith.constant dense<0.000000e+00> : vector<8x8xf32>
    %12 = tpu.matmul %1, %11, %cst_10 {dimension_numbers = #tpu.dot_dimension_numbers<[1], [0], [0], [1], [0, 0, 1, 1], [], []>} : vector<8x32xf32>, vector<32x8xf32>, vector<8x8xf32> -> vector<8x8xf32>
    %c0_11 = arith.constant 0 : index
    %c0_12 = arith.constant 0 : index
    %c0_13 = arith.constant 0 : index
    %c0_14 = arith.constant 0 : index
    %13 = vector.load %arg8[%c0_11, %c0_12, %c0_13, %c0_14] : memref<1x1x8x8xf32, #tpu.memory_space<vmem>>, vector<1x1x8x8xf32>
    %14 = vector.shape_cast %13 : vector<1x1x8x8xf32> to vector<8x8xf32>
    %15 = vector.shape_cast %12 : vector<8x8xf32> to vector<1x1x8x8xf32>
    tpu.vector_store %arg8[%c0_11, %c0_12, %c0_13, %c0_14], %15 {strides = array<i32>} : memref<1x1x8x8xf32, #tpu.memory_space<vmem>>, vector<1x1x8x8xf32>,
    %16 = arith.index_cast %arg2 : i32 to index
    %c0_15 = arith.constant 0 : index
    %c0_16 = arith.constant 0 : index
    %17 = vector.load %arg6[%16, %c0_15, %c0_16] : memref<4x32x8xf32, #tpu.memory_space<vmem>>, vector<1x32x8xf32>
    %18 = vector.shape_cast %17 : vector<1x32x8xf32> to vector<32x8xf32>
    %cst_17 = arith.constant dense<0.000000e+00> : vector<8x8xf32>
    %19 = tpu.matmul %1, %18, %cst_17 {dimension_numbers = #tpu.dot_dimension_numbers<[1], [0], [0], [1], [0, 0, 1, 1], [], []>} : vector<8x32xf32>, vector<32x8xf32>, vector<8x8xf32> -> vector<8x8xf32>
    %c0_18 = arith.constant 0 : index
    %c0_19 = arith.constant 0 : index
    %c0_20 = arith.constant 0 : index
    %c0_21 = arith.constant 0 : index
    %20 = vector.load %arg9[%c0_18, %c0_19, %c0_20, %c0_21] : memref<1x1x8x8xf32, #tpu.memory_space<vmem>>, vector<1x1x8x8xf32>
    %21 = vector.shape_cast %20 : vector<1x1x8x8xf32> to vector<8x8xf32>
    %22 = vector.shape_cast %19 : vector<8x8xf32> to vector<1x1x8x8xf32>
    tpu.vector_store %arg9[%c0_18, %c0_19, %c0_20, %c0_21], %22 {strides = array<i32>} : memref<1x1x8x8xf32, #tpu.memory_space<vmem>>, vector<1x1x8x8xf32>,
    return
  }
  func.func @transform_0(%arg0: i32, %arg1: i32, %arg2: i32) -> (i32, i32, i32) {
    %c0_i32 = arith.constant 0 : i32
    %c0_i32_0 = arith.constant 0 : i32
    return %arg0, %arg1, %c0_i32 : i32, i32, i32
  }
  func.func @transform_1(%arg0: i32, %arg1: i32, %arg2: i32) -> (i32, i32, i32) {
    %c0_i32 = arith.constant 0 : i32
    %c0_i32_0 = arith.constant 0 : i32
    %c0_i32_1 = arith.constant 0 : i32
    %c0_i32_2 = arith.constant 0 : i32
    return %c0_i32, %c0_i32_0, %c0_i32_1 : i32, i32, i32
  }
  func.func @transform_2(%arg0: i32, %arg1: i32, %arg2: i32) -> (i32, i32, i32) {
    %c0_i32 = arith.constant 0 : i32
    %c0_i32_0 = arith.constant 0 : i32
    %c0_i32_1 = arith.constant 0 : i32
    %c0_i32_2 = arith.constant 0 : i32
    return %c0_i32, %c0_i32_0, %c0_i32_1 : i32, i32, i32
  }
  func.func @transform_3(%arg0: i32, %arg1: i32, %arg2: i32) -> (i32, i32, i32) {
    %c0_i32 = arith.constant 0 : i32
    %c0_i32_0 = arith.constant 0 : i32
    %c0_i32_1 = arith.constant 0 : i32
    %c0_i32_2 = arith.constant 0 : i32
    return %c0_i32, %c0_i32_0, %c0_i32_1 : i32, i32, i32
  }
  func.func @transform_4(%arg0: i32, %arg1: i32, %arg2: i32) -> (i32, i32, i32, i32) {
    %c0_i32 = arith.constant 0 : i32
    %c0_i32_0 = arith.constant 0 : i32
    return %arg0, %arg2, %arg1, %c0_i32 : i32, i32, i32, i32
  }
  func.func @transform_5(%arg0: i32, %arg1: i32, %arg2: i32) -> (i32, i32, i32, i32) {
    %c0_i32 = arith.constant 0 : i32
    %c0_i32_0 = arith.constant 0 : i32
    return %arg0, %arg2, %arg1, %c0_i32 : i32, i32, i32, i32
  }
  func.func @transform_6(%arg0: i32, %arg1: i32, %arg2: i32) -> (i32, i32, i32, i32) {
    %c0_i32 = arith.constant 0 : i32
    %c0_i32_0 = arith.constant 0 : i32
    return %arg0, %arg2, %arg1, %c0_i32 : i32, i32, i32, i32
  }
}

</mosaic_0001>

<llo_original>
// kernel: tpu_custom_call.1
$region0: #{tpu_custom_call.1}
  #allocation0 [shape = 'u32[]', space=smem, size = 0x4, offset = 0x4, fixed_abs, tag = 'smem constant byte address 0x4 - core index']
  #allocation1 [shape = 'u32[144,128]{1,0:T(1,128)}', space=vmem, size = 0x12000, scoped, tag = 'internal scratch']
  %s0 = inlined_call_operand.vmem [shape: f32[2,16,32], index: 0, kind: input, shape index: {}]
  %s1 = inlined_call_operand.vmem [shape: f32[4,32,8], index: 1, kind: input, shape index: {}]
  %s2 = inlined_call_operand.vmem [shape: f32[4,32,8], index: 2, kind: input, shape index: {}]
  %s3 = inlined_call_operand.vmem [shape: f32[4,32,8], index: 3, kind: input, shape index: {}]
  %s4 = inlined_call_operand.vmem [shape: f32[2,4,16,8], index: 4, kind: output, shape index: {0}]
  %s5 = inlined_call_operand.vmem [shape: f32[2,4,16,8], index: 5, kind: output, shape index: {1}]
  %s6 = inlined_call_operand.vmem [shape: f32[2,4,16,8], index: 6, kind: output, shape index: {2}]
  %7 = xla_tuple %s4, %s5, %s6
  %s8 = sld [smem:[#allocation0]]
  $region65: #{tpu_custom_call.1} parent=0
    _
  %s10 = ssub.s32 1, %s8
  %s11 = scalar_select 0, %s10, %s8
  loop: start=0, step=1, limit=18
  $region2: #{tpu_custom_call.1} parent=0 // loop_pre_header
    _
  $region3: #{tpu_custom_call.1} parent=0 // loop_header
    %s13 = sphi 0, %s17
    %p14 = scmp.ge.s32.totalorder %s13, 18
    %s20 = sphi 0, %s39
    %s21 = sphi 0, %s35
    %s22 = sphi 0, %s31
    %s23 = sphi 0, %s20
    %s24 = sphi 0, %s21
    %s25 = sphi 0, %s22
    %s26 = sphi 0, %s23
    %s27 = sphi 0, %s24
    %s28 = sphi 0, %s25
    %s44 = sphi 0, %s46
    %s47 = sphi 0, %s44
    %s48 = sphi 0, %s47
    %s64 = sphi 0, %s48
    %s68 = sphi 0, %s68
    %s70 = sphi 0, %s68
    %s71 = sphi 0, %s70
    %s85 = sphi 0, %s71
    %s89 = sphi 0, %s89
    %s91 = sphi 0, %s89
    %s92 = sphi 0, %s91
    %s106 = sphi 0, %s92
    %s110 = sphi 0, %s110
    %s112 = sphi 0, %s110
    %s113 = sphi 0, %s112
    %s127 = sphi 0, %s113
    %s137 = sphi 0, %s139
    %s140 = sphi 0, %s137
    %s141 = sphi 0, %s140
    %s157 = sphi 0, %s141
    %s167 = sphi 0, %s169
    %s170 = sphi 0, %s167
    %s171 = sphi 0, %s170
    %s187 = sphi 0, %s171
    %s197 = sphi 0, %s199
    %s200 = sphi 0, %s197
    %s201 = sphi 0, %s200
    %s217 = sphi 0, %s201
  $region4: #{tpu_custom_call.1} parent=0 // loop_header_branch
    %16 = sbr.rel (%p14) target = $region8
  $region5: #{tpu_custom_call.1} parent=0 // loop_body
    %s18 = ssub.s32 %s13, 1
    %s19 = ssub.s32 %s13, 2
    %s29 = sadd.s32 1, %s22
    %p30 = scmp.ge.s32.totalorder %s29, 4
    %s31 = scalar_select %p30, 0, %s29
    %s32 = sadd.s32 1, %s21
    %s33 = scalar_select %p30, %s32, %s21
    %p34 = scmp.ge.s32.totalorder %s33, 2
    %s35 = scalar_select %p34, 0, %s33
    %s36 = sadd.s32 1, %s20
    %s37 = scalar_select %p34, %s36, %s20
    %p38 = scmp.ge.s32.totalorder %s37, 2
    %s39 = scalar_select %p38, 0, %s37
    %s40 = ssub.s32 %s20, %s39
    %s41 = ssub.s32 %s21, %s35
    %s42 = sor.u32 %s40, %s41
    %p43 = scmp.eq.s32.totalorder %s42, 0
    %s45 = sadd.s32 %s44, 1
    %s46 = scalar_select %p43, %s44, %s45
    %p49 = pneg %p43
    %p50 = scmp.eq.s32.totalorder %s13, 15
    %p51 = por %p49, %p50
    %p52 = scmp.ne.s32.totalorder %s44, %s47
    %p53 = scmp.eq.s32.totalorder %s13, 0
    %p54 = por %p52, %p53
    %p55 = scmp.ne.s32.totalorder %s44, %s47
    %p56 = scmp.eq.s32.totalorder %s18, 15
    %p57 = por %p55, %p56
    %p58 = scmp.ne.s32.totalorder %s47, %s48
    %p59 = scmp.eq.s32.totalorder %s18, 0
    %p60 = por %p58, %p59
    %p61 = scmp.ne.s32.totalorder %s47, %s48
    %p62 = scmp.eq.s32.totalorder %s19, 15
    %p63 = por %p61, %p62
    %p65 = scmp.ne.s32.totalorder %s48, %s64
    %p66 = scmp.eq.s32.totalorder %s19, 0
    %p67 = por %p65, %p66
    %s69 = sadd.s32 %s68, 1
    %p72 = scmp.eq.s32.totalorder %s13, 15
    %p73 = scmp.ne.s32.totalorder %s68, %s70
    %p74 = scmp.eq.s32.totalorder %s13, 0
    %p75 = por %p73, %p74
    %p76 = scmp.ne.s32.totalorder %s68, %s70
    %p77 = scmp.eq.s32.totalorder %s18, 15
    %p78 = por %p76, %p77
    %p79 = scmp.ne.s32.totalorder %s70, %s71
    %p80 = scmp.eq.s32.totalorder %s18, 0
    %p81 = por %p79, %p80
    %p82 = scmp.ne.s32.totalorder %s70, %s71
    %p83 = scmp.eq.s32.totalorder %s19, 15
    %p84 = por %p82, %p83
    %p86 = scmp.ne.s32.totalorder %s71, %s85
    %p87 = scmp.eq.s32.totalorder %s19, 0
    %p88 = por %p86, %p87
    %s90 = sadd.s32 %s89, 1
    %p93 = scmp.eq.s32.totalorder %s13, 15
    %p94 = scmp.ne.s32.totalorder %s89, %s91
    %p95 = scmp.eq.s32.totalorder %s13, 0
    %p96 = por %p94, %p95
    %p97 = scmp.ne.s32.totalorder %s89, %s91
    %p98 = scmp.eq.s32.totalorder %s18, 15
    %p99 = por %p97, %p98
    %p100 = scmp.ne.s32.totalorder %s91, %s92
    %p101 = scmp.eq.s32.totalorder %s18, 0
    %p102 = por %p100, %p101
    %p103 = scmp.ne.s32.totalorder %s91, %s92
    %p104 = scmp.eq.s32.totalorder %s19, 15
    %p105 = por %p103, %p104
    %p107 = scmp.ne.s32.totalorder %s92, %s106
    %p108 = scmp.eq.s32.totalorder %s19, 0
    %p109 = por %p107, %p108
    %s111 = sadd.s32 %s110, 1
    %p114 = scmp.eq.s32.totalorder %s13, 15
    %p115 = scmp.ne.s32.totalorder %s110, %s112
    %p116 = scmp.eq.s32.totalorder %s13, 0
    %p117 = por %p115, %p116
    %p118 = scmp.ne.s32.totalorder %s110, %s112
    %p119 = scmp.eq.s32.totalorder %s18, 15
    %p120 = por %p118, %p119
    %p121 = scmp.ne.s32.totalorder %s112, %s113
    %p122 = scmp.eq.s32.totalorder %s18, 0
    %p123 = por %p121, %p122
    %p124 = scmp.ne.s32.totalorder %s112, %s113
    %p125 = scmp.eq.s32.totalorder %s19, 15
    %p126 = por %p124, %p125
    %p128 = scmp.ne.s32.totalorder %s113, %s127
    %p129 = scmp.eq.s32.totalorder %s19, 0
    %p130 = por %p128, %p129
    %s131 = ssub.s32 %s20, %s39
    %s132 = ssub.s32 %s22, %s31
    %s133 = sor.u32 %s131, %s132
    %s134 = ssub.s32 %s21, %s35
    %s135 = sor.u32 %s133, %s134
    %p136 = scmp.eq.s32.totalorder %s135, 0
    %s138 = sadd.s32 %s137, 1
    %s139 = scalar_select %p136, %s137, %s138
    %p142 = pneg %p136
    %p143 = scmp.eq.s32.totalorder %s13, 15
    %p144 = por %p142, %p143
    %p145 = scmp.ne.s32.totalorder %s137, %s140
    %p146 = scmp.eq.s32.totalorder %s13, 0
    %p147 = por %p145, %p146
    %p148 = scmp.ne.s32.totalorder %s137, %s140
    %p149 = scmp.eq.s32.totalorder %s18, 15
    %p150 = por %p148, %p149
    %p151 = scmp.ne.s32.totalorder %s140, %s141
    %p152 = scmp.eq.s32.totalorder %s18, 0
    %p153 = por %p151, %p152
    %p154 = scmp.ne.s32.totalorder %s140, %s141
    %p155 = scmp.eq.s32.totalorder %s19, 15
    %p156 = por %p154, %p155
    %p158 = scmp.ne.s32.totalorder %s141, %s157
    %p159 = scmp.eq.s32.totalorder %s19, 0
    %p160 = por %p158, %p159
    %s161 = ssub.s32 %s20, %s39
    %s162 = ssub.s32 %s22, %s31
    %s163 = sor.u32 %s161, %s162
    %s164 = ssub.s32 %s21, %s35
    %s165 = sor.u32 %s163, %s164
    %p166 = scmp.eq.s32.totalorder %s165, 0
    %s168 = sadd.s32 %s167, 1
    %s169 = scalar_select %p166, %s167, %s168
    %p172 = pneg %p166
    %p173 = scmp.eq.s32.totalorder %s13, 15
    %p174 = por %p172, %p173
    %p175 = scmp.ne.s32.totalorder %s167, %s170
    %p176 = scmp.eq.s32.totalorder %s13, 0
    %p177 = por %p175, %p176
    %p178 = scmp.ne.s32.totalorder %s167, %s170
    %p179 = scmp.eq.s32.totalorder %s18, 15
    %p180 = por %p178, %p179
    %p181 = scmp.ne.s32.totalorder %s170, %s171
    %p182 = scmp.eq.s32.totalorder %s18, 0
    %p183 = por %p181, %p182
    %p184 = scmp.ne.s32.totalorder %s170, %s171
    %p185 = scmp.eq.s32.totalorder %s19, 15
    %p186 = por %p184, %p185
    %p188 = scmp.ne.s32.totalorder %s171, %s187
    %p189 = scmp.eq.s32.totalorder %s19, 0
    %p190 = por %p188, %p189
    %s191 = ssub.s32 %s20, %s39
    %s192 = ssub.s32 %s22, %s31
    %s193 = sor.u32 %s191, %s192
    %s194 = ssub.s32 %s21, %s35
    %s195 = sor.u32 %s193, %s194
    %p196 = scmp.eq.s32.totalorder %s195, 0
    %s198 = sadd.s32 %s197, 1
    %s199 = scalar_select %p196, %s197, %s198
    %p202 = pneg %p196
    %p203 = scmp.eq.s32.totalorder %s13, 15
    %p204 = por %p202, %p203
    %p205 = scmp.ne.s32.totalorder %s197, %s200
    %p206 = scmp.eq.s32.totalorder %s13, 0
    %p207 = por %p205, %p206
    %p208 = scmp.ne.s32.totalorder %s197, %s200
    %p209 = scmp.eq.s32.totalorder %s18, 15
    %p210 = por %p208, %p209
    %p211 = scmp.ne.s32.totalorder %s200, %s201
    %p212 = scmp.eq.s32.totalorder %s18, 0
    %p213 = por %p211, %p212
    %p214 = scmp.ne.s32.totalorder %s200, %s201
    %p215 = scmp.eq.s32.totalorder %s19, 15
    %p216 = por %p214, %p215
    %p218 = scmp.ne.s32.totalorder %s201, %s217
    %p219 = scmp.eq.s32.totalorder %s19, 0
    %p220 = por %p218, %p219
    %p221 = scmp.le.s32.totalorder 1, %s13
    %p222 = scmp.lt.s32.totalorder %s13, 17
    %p223 = pnand %p221, %p222
    %p224 = pneg %p223
    // Predicated region
    $region9: #{tpu_custom_call.1} parent=5 // pred_check
      _
    $region10: #{tpu_custom_call.1} parent=5 // pred_check_branch
      %226 = sbr.rel (%p223) target = $region12
    $region11: #{tpu_custom_call.1} parent=5 // pred_region
      %s227 = ssub.s32 %s13, 1
      // Predicated region
      $region13: #{tpu_custom_call.1} parent=11 // pred_check
        %p228 = pneg %p81
      $region14: #{tpu_custom_call.1} parent=11 // pred_check_branch
        %230 = sbr.rel (%p228) target = $region16
      $region15: #{tpu_custom_call.1} parent=11 // pred_region
        _
      $region16: #{tpu_custom_call.1} parent=11 // pred_fallthru
        _
      // Predicated region
      $region17: #{tpu_custom_call.1} parent=11 // pred_check
        %p231 = pneg %p102
      $region18: #{tpu_custom_call.1} parent=11 // pred_check_branch
        %233 = sbr.rel (%p231) target = $region20
      $region19: #{tpu_custom_call.1} parent=11 // pred_region
        _
      $region20: #{tpu_custom_call.1} parent=11 // pred_fallthru
        _
      // Predicated region
      $region21: #{tpu_custom_call.1} parent=11 // pred_check
        %p234 = pneg %p123
      $region22: #{tpu_custom_call.1} parent=11 // pred_check_branch
        %236 = sbr.rel (%p234) target = $region24
      $region23: #{tpu_custom_call.1} parent=11 // pred_region
        _
      $region24: #{tpu_custom_call.1} parent=11 // pred_fallthru
        _
    $region12: #{tpu_custom_call.1} parent=5 // pred_fallthru
      _
    %p237 = scmp.lt.s32.totalorder %s13, 16
    // Predicated region
    $region25: #{tpu_custom_call.1} parent=5 // pred_check
      %p238 = pneg %p237
    $region26: #{tpu_custom_call.1} parent=5 // pred_check_branch
      %240 = sbr.rel (%p238) target = $region28
    $region27: #{tpu_custom_call.1} parent=5 // pred_region
      // Predicated region
      $region29: #{tpu_custom_call.1} parent=27 // pred_check
        %p241 = pneg %p54
      $region30: #{tpu_custom_call.1} parent=27 // pred_check_branch
        %243 = sbr.rel (%p241) target = $region32
      $region31: #{tpu_custom_call.1} parent=27 // pred_region
        %p244 = scmp.lt.s32.totalorder %s20, 1
        %s245 = scalar_select %p244, %s20, 1
        %p246 = scmp.lt.s32.totalorder %s21, 1
        %s247 = scalar_select %p246, %s21, 1
        %s248 = smul.addr %s245, 2
        %s249 = sadd.s32 %s247, %s248
        %s250 = smul.addr %s249, 8
        %s251 = scalar_lea.vmem %s0, %s250
      $region32: #{tpu_custom_call.1} parent=27 // pred_fallthru
        _
    $region28: #{tpu_custom_call.1} parent=5 // pred_fallthru
      _
    %p252 = scmp.le.s32.totalorder 1, %s13
    %p253 = scmp.lt.s32.totalorder %s13, 17
    %p254 = pnand %p252, %p253
    %p255 = pneg %p254
    // Predicated region
    $region33: #{tpu_custom_call.1} parent=5 // pred_check
      _
    $region34: #{tpu_custom_call.1} parent=5 // pred_check_branch
      %257 = sbr.rel (%p254) target = $region36
    $region35: #{tpu_custom_call.1} parent=5 // pred_region
      %s258 = ssub.s32 %s13, 1
      %p259 = scmp.lt.s32.totalorder %s23, 1
      %s260 = scalar_select %p259, %s23, 1
      %p261 = scmp.lt.s32.totalorder %s24, 1
      %s262 = scalar_select %p261, %s24, 1
      %s263 = smul.addr %s260, 2
      %s264 = sadd.s32 %s262, %s263
      %s265 = smul.addr %s264, 8
      %s266 = scalar_lea.vmem %s0, %s265
      %p267 = pneg %p60
      %p268 = pneg %p57
      %p269 = pneg %p81
      %p270 = pneg %p78
      %p271 = pneg %p102
      %p272 = pneg %p99
      %p273 = pneg %p123
      %p274 = pneg %p120
      %p275 = pneg %p153
      %p276 = pneg %p150
      %p277 = scmp.lt.s32.totalorder %s23, 1
      %s278 = scalar_select %p277, %s23, 1
      %p279 = scmp.lt.s32.totalorder %s25, 3
      %s280 = scalar_select %p279, %s25, 3
      %p281 = scmp.lt.s32.totalorder %s24, 1
      %s282 = scalar_select %p281, %s24, 1
      %s283 = smul.addr %s280, 2
      %s284 = sadd.s32 %s282, %s283
      %s285 = smul.addr %s278, 8
      %s286 = sadd.s32 %s284, %s285
      %s287 = smul.addr %s286, 8
      %s288 = scalar_lea.vmem %s4, %s287
      %p289 = pneg %p183
      %p290 = pneg %p180
      %p291 = scmp.lt.s32.totalorder %s23, 1
      %s292 = scalar_select %p291, %s23, 1
      %p293 = scmp.lt.s32.totalorder %s25, 3
      %s294 = scalar_select %p293, %s25, 3
      %p295 = scmp.lt.s32.totalorder %s24, 1
      %s296 = scalar_select %p295, %s24, 1
      %s297 = smul.addr %s294, 2
      %s298 = sadd.s32 %s296, %s297
      %s299 = smul.addr %s292, 8
      %s300 = sadd.s32 %s298, %s299
      %s301 = smul.addr %s300, 8
      %s302 = scalar_lea.vmem %s5, %s301
      %p303 = pneg %p213
      %p304 = pneg %p210
      %p305 = scmp.lt.s32.totalorder %s23, 1
      %s306 = scalar_select %p305, %s23, 1
      %p307 = scmp.lt.s32.totalorder %s25, 3
      %s308 = scalar_select %p307, %s25, 3
      %p309 = scmp.lt.s32.totalorder %s24, 1
      %s310 = scalar_select %p309, %s24, 1
      %s311 = smul.addr %s308, 2
      %s312 = sadd.s32 %s310, %s311
      %s313 = smul.addr %s306, 8
      %s314 = sadd.s32 %s312, %s313
      %s315 = smul.addr %s314, 8
      %s316 = scalar_lea.vmem %s6, %s315
      %p317 = scmp.lt.s32.totalorder %s23, 1
      %s318 = scalar_select %p317, %s23, 1
      %p319 = scmp.lt.s32.totalorder %s24, 1
      %s320 = scalar_select %p319, %s24, 1
      %s321 = smul.addr %s318, 2
      %s322 = sadd.s32 %s320, %s321
      %s323 = smul.addr %s322, 8
      %s324 = scalar_lea.vmem %s0, %s323
      %p325 = scmp.lt.s32.totalorder %s23, 1
      %s326 = scalar_select %p325, %s23, 1
      %p327 = scmp.lt.s32.totalorder %s25, 3
      %s328 = scalar_select %p327, %s25, 3
      %p329 = scmp.lt.s32.totalorder %s24, 1
      %s330 = scalar_select %p329, %s24, 1
      %s331 = smul.addr %s328, 2
      %s332 = sadd.s32 %s330, %s331
      %s333 = smul.addr %s326, 8
      %s334 = sadd.s32 %s332, %s333
      %s335 = smul.addr %s334, 8
      %s336 = scalar_lea.vmem %s4, %s335
      %p337 = scmp.lt.s32.totalorder %s23, 1
      %s338 = scalar_select %p337, %s23, 1
      %p339 = scmp.lt.s32.totalorder %s25, 3
      %s340 = scalar_select %p339, %s25, 3
      %p341 = scmp.lt.s32.totalorder %s24, 1
      %s342 = scalar_select %p341, %s24, 1
      %s343 = smul.addr %s340, 2
      %s344 = sadd.s32 %s342, %s343
      %s345 = smul.addr %s338, 8
      %s346 = sadd.s32 %s344, %s345
      %s347 = smul.addr %s346, 8
      %s348 = scalar_lea.vmem %s5, %s347
      %p349 = scmp.lt.s32.totalorder %s23, 1
      %s350 = scalar_select %p349, %s23, 1
      %p351 = scmp.lt.s32.totalorder %s25, 3
      %s352 = scalar_select %p351, %s25, 3
      %p353 = scmp.lt.s32.totalorder %s24, 1
      %s354 = scalar_select %p353, %s24, 1
      %s355 = smul.addr %s352, 2
      %s356 = sadd.s32 %s354, %s355
      %s357 = smul.addr %s350, 8
      %s358 = sadd.s32 %s356, %s357
      %s359 = smul.addr %s358, 8
      %s360 = scalar_lea.vmem %s6, %s359
      %v361 = vld [vmem:[%s324] sm:$0xff]
      %s362 = smul.u32 %s25, 32
      %s363 = scalar_lea.vmem %s1, %s362
      %v364 = vld [vmem:[%s363] sm:$0xff]
      %v365 = vld [vmem:[%s363 + $0x8] sm:$0xff]
      %v366 = vld [vmem:[%s363 + $0x10] sm:$0xff]
      %v367 = vld [vmem:[%s363 + $0x18] sm:$0xff]
      %vm368 = vcmask 261120
      %v370 = vsel %vm368, %v361, 0
      %372 = vmatprep.subr.mxu0 0.0
      %373 = vmatpush1.msra.mxu0 %v364
      %374 = vmatprep.subr.mxu0 0.0
      %375 = vmatpush1.msra.mxu0 %v365
      %376 = vmatprep.subr.mxu0 0.0
      %377 = vmatpush1.msra.mxu0 %v366
      %378 = vmatprep.subr.mxu0 0.0
      %379 = vmatpush1.msra.mxu0 %v367
      %380 = vmatprep.subr.mxu0 0.0
      %381 = vmatpush1.msra.mxu0 0.0
      %382 = vmatprep.subr.mxu0 0.0
      %383 = vmatpush1.msra.mxu0 0.0
      %384 = vmatprep.subr.mxu0 0.0
      %385 = vmatpush1.msra.mxu0 0.0
      %386 = vmatprep.subr.mxu0 0.0
      %387 = vmatpush1.msra.mxu0 0.0
      %388 = vmatprep.subr.mxu0 0.0
      %389 = vmatpush1.msra.mxu0 0.0
      %390 = vmatprep.subr.mxu0 0.0
      %391 = vmatpush1.msra.mxu0 0.0
      %392 = vmatprep.subr.mxu0 0.0
      %393 = vmatpush1.msra.mxu0 0.0
      %394 = vmatprep.subr.mxu0 0.0
      %395 = vmatpush1.msra.mxu0 0.0
      %396 = vmatprep.subr.mxu0 0.0
      %397 = vmatpush1.msra.mxu0 0.0
      %398 = vmatprep.subr.mxu0 0.0
      %399 = vmatpush1.msra.mxu0 0.0
      %400 = vmatprep.subr.mxu0 0.0
      %401 = vmatpush1.msra.mxu0 0.0
      %402 = vmatprep.subr.mxu0 0.0
      %403 = vmatpush1.msra.mxu0 0.0
      %404 = vmatprep.subr.mxu0 0.0
      %405 = vmatpush1.msra.mxu0 0.0
      %406 = vmatprep.subr.mxu0 0.0
      %407 = vmatpush1.msra.mxu0 0.0
      %408 = vmatprep.subr.mxu0 0.0
      %409 = vmatpush1.msra.mxu0 0.0
      %410 = vmatprep.subr.mxu0 0.0
      %411 = vmatpush1.msra.mxu0 0.0
      %412 = vmatprep.subr.mxu0 0.0
      %413 = vmatpush1.msra.mxu0 0.0
      %414 = vmatprep.subr.mxu0 0.0
      %415 = vmatpush1.msra.mxu0 0.0
      %416 = vmatprep.subr.mxu0 0.0
      %417 = vmatpush1.msra.mxu0 0.0
      %418 = vmatprep.subr.mxu0 0.0
      %419 = vmatpush1.msra.mxu0 0.0
      %420 = vmatprep.subr.mxu0 0.0
      %421 = vmatpush1.msra.mxu0 0.0
      %422 = vmatprep.subr.mxu0 0.0
      %423 = vmatpush1.msra.mxu0 0.0
      %424 = vmatprep.subr.mxu0 0.0
      %425 = vmatpush1.msra.mxu0 0.0
      %426 = vmatprep.subr.mxu0 0.0
      %427 = vmatpush1.msra.mxu0 0.0
      %428 = vmatprep.subr.mxu0 0.0
      %429 = vmatpush1.msra.mxu0 0.0
      %430 = vmatprep.subr.mxu0 0.0
      %431 = vmatpush1.msra.mxu0 0.0
      %432 = vmatprep.subr.mxu0 0.0
      %433 = vmatpush1.msra.mxu0 0.0
      %434 = vmatprep.subr.mxu0 0.0
      %435 = vmatpush1.msra.mxu0 0.0
      %436 = vmatprep.mubr.f32.mxu0 0.0
      %437 = vmatmul.mubr.f32.gmra.mrb[0].mxu0 %v370
      %v438 = vpop.f32.mrb[0].mxu0
      %v439 = vadd.f32 0.0, %v438
      %v440 = vpop.f32.mrb[0].mxu0
      %441 = vdwg.mxu0
      %vm442 = vcmask 64512
      %443 = vst.msk [vmem:[%s336] sm:$0xff] %vm442, %v439
      %s444 = scalar_lea.vmem %s2, %s362
      %v445 = vld [vmem:[%s444] sm:$0xff]
      %v446 = vld [vmem:[%s444 + $0x8] sm:$0xff]
      %v447 = vld [vmem:[%s444 + $0x10] sm:$0xff]
      %v448 = vld [vmem:[%s444 + $0x18] sm:$0xff]
      %449 = vmatprep.subr.mxu0 0.0
      %450 = vmatpush1.msra.mxu0 %v445
      %451 = vmatprep.subr.mxu0 0.0
      %452 = vmatpush1.msra.mxu0 %v446
      %453 = vmatprep.subr.mxu0 0.0
      %454 = vmatpush1.msra.mxu0 %v447
      %455 = vmatprep.subr.mxu0 0.0
      %456 = vmatpush1.msra.mxu0 %v448
      %457 = vmatprep.subr.mxu0 0.0
      %458 = vmatpush1.msra.mxu0 0.0
      %459 = vmatprep.subr.mxu0 0.0
      %460 = vmatpush1.msra.mxu0 0.0
      %461 = vmatprep.subr.mxu0 0.0
      %462 = vmatpush1.msra.mxu0 0.0
      %463 = vmatprep.subr.mxu0 0.0
      %464 = vmatpush1.msra.mxu0 0.0
      %465 = vmatprep.subr.mxu0 0.0
      %466 = vmatpush1.msra.mxu0 0.0
      %467 = vmatprep.subr.mxu0 0.0
      %468 = vmatpush1.msra.mxu0 0.0
      %469 = vmatprep.subr.mxu0 0.0
      %470 = vmatpush1.msra.mxu0 0.0
      %471 = vmatprep.subr.mxu0 0.0
      %472 = vmatpush1.msra.mxu0 0.0
      %473 = vmatprep.subr.mxu0 0.0
      %474 = vmatpush1.msra.mxu0 0.0
      %475 = vmatprep.subr.mxu0 0.0
      %476 = vmatpush1.msra.mxu0 0.0
      %477 = vmatprep.subr.mxu0 0.0
      %478 = vmatpush1.msra.mxu0 0.0
      %479 = vmatprep.subr.mxu0 0.0
      %480 = vmatpush1.msra.mxu0 0.0
      %481 = vmatprep.subr.mxu0 0.0
      %482 = vmatpush1.msra.mxu0 0.0
      %483 = vmatprep.subr.mxu0 0.0
      %484 = vmatpush1.msra.mxu0 0.0
      %485 = vmatprep.subr.mxu0 0.0
      %486 = vmatpush1.msra.mxu0 0.0
      %487 = vmatprep.subr.mxu0 0.0
      %488 = vmatpush1.msra.mxu0 0.0
      %489 = vmatprep.subr.mxu0 0.0
      %490 = vmatpush1.msra.mxu0 0.0
      %491 = vmatprep.subr.mxu0 0.0
      %492 = vmatpush1.msra.mxu0 0.0
      %493 = vmatprep.subr.mxu0 0.0
      %494 = vmatpush1.msra.mxu0 0.0
      %495 = vmatprep.subr.mxu0 0.0
      %496 = vmatpush1.msra.mxu0 0.0
      %497 = vmatprep.subr.mxu0 0.0
      %498 = vmatpush1.msra.mxu0 0.0
      %499 = vmatprep.subr.mxu0 0.0
      %500 = vmatpush1.msra.mxu0 0.0
      %501 = vmatprep.subr.mxu0 0.0
      %502 = vmatpush1.msra.mxu0 0.0
      %503 = vmatprep.subr.mxu0 0.0
      %504 = vmatpush1.msra.mxu0 0.0
      %505 = vmatprep.subr.mxu0 0.0
      %506 = vmatpush1.msra.mxu0 0.0
      %507 = vmatprep.subr.mxu0 0.0
      %508 = vmatpush1.msra.mxu0 0.0
      %509 = vmatprep.subr.mxu0 0.0
      %510 = vmatpush1.msra.mxu0 0.0
      %511 = vmatprep.subr.mxu0 0.0
      %512 = vmatpush1.msra.mxu0 0.0
      %513 = vmatprep.mubr.f32.mxu0 0.0
      %514 = vmatmul.mubr.f32.gmra.mrb[0].mxu0 %v370
      %v515 = vpop.f32.mrb[0].mxu0
      %v516 = vadd.f32 0.0, %v515
      %v517 = vpop.f32.mrb[0].mxu0
      %518 = vdwg.mxu0
      %519 = vst.msk [vmem:[%s348] sm:$0xff] %vm442, %v516
      %s520 = scalar_lea.vmem %s3, %s362
      %v521 = vld [vmem:[%s520] sm:$0xff]
      %v522 = vld [vmem:[%s520 + $0x8] sm:$0xff]
      %v523 = vld [vmem:[%s520 + $0x10] sm:$0xff]
      %v524 = vld [vmem:[%s520 + $0x18] sm:$0xff]
      %525 = vmatprep.subr.mxu0 0.0
      %526 = vmatpush1.msra.mxu0 %v521
      %527 = vmatprep.subr.mxu0 0.0
      %528 = vmatpush1.msra.mxu0 %v522
      %529 = vmatprep.subr.mxu0 0.0
      %530 = vmatpush1.msra.mxu0 %v523
      %531 = vmatprep.subr.mxu0 0.0
      %532 = vmatpush1.msra.mxu0 %v524
      %533 = vmatprep.subr.mxu0 0.0
      %534 = vmatpush1.msra.mxu0 0.0
      %535 = vmatprep.subr.mxu0 0.0
      %536 = vmatpush1.msra.mxu0 0.0
      %537 = vmatprep.subr.mxu0 0.0
      %538 = vmatpush1.msra.mxu0 0.0
      %539 = vmatprep.subr.mxu0 0.0
      %540 = vmatpush1.msra.mxu0 0.0
      %541 = vmatprep.subr.mxu0 0.0
      %542 = vmatpush1.msra.mxu0 0.0
      %543 = vmatprep.subr.mxu0 0.0
      %544 = vmatpush1.msra.mxu0 0.0
      %545 = vmatprep.subr.mxu0 0.0
      %546 = vmatpush1.msra.mxu0 0.0
      %547 = vmatprep.subr.mxu0 0.0
      %548 = vmatpush1.msra.mxu0 0.0
      %549 = vmatprep.subr.mxu0 0.0
      %550 = vmatpush1.msra.mxu0 0.0
      %551 = vmatprep.subr.mxu0 0.0
      %552 = vmatpush1.msra.mxu0 0.0
      %553 = vmatprep.subr.mxu0 0.0
      %554 = vmatpush1.msra.mxu0 0.0
      %555 = vmatprep.subr.mxu0 0.0
      %556 = vmatpush1.msra.mxu0 0.0
      %557 = vmatprep.subr.mxu0 0.0
      %558 = vmatpush1.msra.mxu0 0.0
      %559 = vmatprep.subr.mxu0 0.0
      %560 = vmatpush1.msra.mxu0 0.0
      %561 = vmatprep.subr.mxu0 0.0
      %562 = vmatpush1.msra.mxu0 0.0
      %563 = vmatprep.subr.mxu0 0.0
      %564 = vmatpush1.msra.mxu0 0.0
      %565 = vmatprep.subr.mxu0 0.0
      %566 = vmatpush1.msra.mxu0 0.0
      %567 = vmatprep.subr.mxu0 0.0
      %568 = vmatpush1.msra.mxu0 0.0
      %569 = vmatprep.subr.mxu0 0.0
      %570 = vmatpush1.msra.mxu0 0.0
      %571 = vmatprep.subr.mxu0 0.0
      %572 = vmatpush1.msra.mxu0 0.0
      %573 = vmatprep.subr.mxu0 0.0
      %574 = vmatpush1.msra.mxu0 0.0
      %575 = vmatprep.subr.mxu0 0.0
      %576 = vmatpush1.msra.mxu0 0.0
      %577 = vmatprep.subr.mxu0 0.0
      %578 = vmatpush1.msra.mxu0 0.0
      %579 = vmatprep.subr.mxu0 0.0
      %580 = vmatpush1.msra.mxu0 0.0
      %581 = vmatprep.subr.mxu0 0.0
      %582 = vmatpush1.msra.mxu0 0.0
      %583 = vmatprep.subr.mxu0 0.0
      %584 = vmatpush1.msra.mxu0 0.0
      %585 = vmatprep.subr.mxu0 0.0
      %586 = vmatpush1.msra.mxu0 0.0
      %587 = vmatprep.subr.mxu0 0.0
      %588 = vmatpush1.msra.mxu0 0.0
      %589 = vmatprep.mubr.f32.mxu0 0.0
      %590 = vmatmul.mubr.f32.gmra.mrb[0].mxu0 %v370
      %v591 = vpop.f32.mrb[0].mxu0
      %v592 = vadd.f32 0.0, %v591
      %v593 = vpop.f32.mrb[0].mxu0
      %594 = vdwg.mxu0
      %595 = vst.msk [vmem:[%s360] sm:$0xff] %vm442, %v592
      %p596 = scmp.lt.s32.totalorder %s23, 1
      %s597 = scalar_select %p596, %s23, 1
      %p598 = scmp.lt.s32.totalorder %s25, 3
      %s599 = scalar_select %p598, %s25, 3
      %p600 = scmp.lt.s32.totalorder %s24, 1
      %s601 = scalar_select %p600, %s24, 1
      %s602 = smul.addr %s599, 2
      %s603 = sadd.s32 %s601, %s602
      %s604 = smul.addr %s597, 8
      %s605 = sadd.s32 %s603, %s604
      %s606 = smul.addr %s605, 8
      %s607 = scalar_lea.vmem %s4, %s606
      %p608 = scmp.lt.s32.totalorder %s23, 1
      %s609 = scalar_select %p608, %s23, 1
      %p610 = scmp.lt.s32.totalorder %s25, 3
      %s611 = scalar_select %p610, %s25, 3
      %p612 = scmp.lt.s32.totalorder %s24, 1
      %s613 = scalar_select %p612, %s24, 1
      %s614 = smul.addr %s611, 2
      %s615 = sadd.s32 %s613, %s614
      %s616 = smul.addr %s609, 8
      %s617 = sadd.s32 %s615, %s616
      %s618 = smul.addr %s617, 8
      %s619 = scalar_lea.vmem %s5, %s618
      %p620 = scmp.lt.s32.totalorder %s23, 1
      %s621 = scalar_select %p620, %s23, 1
      %p622 = scmp.lt.s32.totalorder %s25, 3
      %s623 = scalar_select %p622, %s25, 3
      %p624 = scmp.lt.s32.totalorder %s24, 1
      %s625 = scalar_select %p624, %s24, 1
      %s626 = smul.addr %s623, 2
      %s627 = sadd.s32 %s625, %s626
      %s628 = smul.addr %s621, 8
      %s629 = sadd.s32 %s627, %s628
      %s630 = smul.addr %s629, 8
      %s631 = scalar_lea.vmem %s6, %s630
      // Predicated region
      $region37: #{tpu_custom_call.1} parent=35 // pred_check
        %p632 = pneg %p150
      $region38: #{tpu_custom_call.1} parent=35 // pred_check_branch
        %634 = sbr.rel (%p632) target = $region40
      $region39: #{tpu_custom_call.1} parent=35 // pred_region
        _
      $region40: #{tpu_custom_call.1} parent=35 // pred_fallthru
        _
      // Predicated region
      $region41: #{tpu_custom_call.1} parent=35 // pred_check
        %p635 = pneg %p180
      $region42: #{tpu_custom_call.1} parent=35 // pred_check_branch
        %637 = sbr.rel (%p635) target = $region44
      $region43: #{tpu_custom_call.1} parent=35 // pred_region
        _
      $region44: #{tpu_custom_call.1} parent=35 // pred_fallthru
        _
      // Predicated region
      $region45: #{tpu_custom_call.1} parent=35 // pred_check
        %p638 = pneg %p210
      $region46: #{tpu_custom_call.1} parent=35 // pred_check_branch
        %640 = sbr.rel (%p638) target = $region48
      $region47: #{tpu_custom_call.1} parent=35 // pred_region
        _
      $region48: #{tpu_custom_call.1} parent=35 // pred_fallthru
        _
    $region36: #{tpu_custom_call.1} parent=5 // pred_fallthru
      _
    %p641 = scmp.le.s32.totalorder 2, %s13
    // Predicated region
    $region49: #{tpu_custom_call.1} parent=5 // pred_check
      %p642 = pneg %p641
    $region50: #{tpu_custom_call.1} parent=5 // pred_check_branch
      %644 = sbr.rel (%p642) target = $region52
    $region51: #{tpu_custom_call.1} parent=5 // pred_region
      %s645 = ssub.s32 %s13, 2
      // Predicated region
      $region53: #{tpu_custom_call.1} parent=51 // pred_check
        %p646 = pneg %p156
      $region54: #{tpu_custom_call.1} parent=51 // pred_check_branch
        %648 = sbr.rel (%p646) target = $region56
      $region55: #{tpu_custom_call.1} parent=51 // pred_region
        %p649 = scmp.lt.s32.totalorder %s26, 1
        %s650 = scalar_select %p649, %s26, 1
        %p651 = scmp.lt.s32.totalorder %s28, 3
        %s652 = scalar_select %p651, %s28, 3
        %p653 = scmp.lt.s32.totalorder %s27, 1
        %s654 = scalar_select %p653, %s27, 1
        %s655 = smul.addr %s652, 2
        %s656 = sadd.s32 %s654, %s655
        %s657 = smul.addr %s650, 8
        %s658 = sadd.s32 %s656, %s657
        %s659 = smul.addr %s658, 8
        %s660 = scalar_lea.vmem %s4, %s659
      $region56: #{tpu_custom_call.1} parent=51 // pred_fallthru
        _
      // Predicated region
      $region57: #{tpu_custom_call.1} parent=51 // pred_check
        %p661 = pneg %p186
      $region58: #{tpu_custom_call.1} parent=51 // pred_check_branch
        %663 = sbr.rel (%p661) target = $region60
      $region59: #{tpu_custom_call.1} parent=51 // pred_region
        %p664 = scmp.lt.s32.totalorder %s26, 1
        %s665 = scalar_select %p664, %s26, 1
        %p666 = scmp.lt.s32.totalorder %s28, 3
        %s667 = scalar_select %p666, %s28, 3
        %p668 = scmp.lt.s32.totalorder %s27, 1
        %s669 = scalar_select %p668, %s27, 1
        %s670 = smul.addr %s667, 2
        %s671 = sadd.s32 %s669, %s670
        %s672 = smul.addr %s665, 8
        %s673 = sadd.s32 %s671, %s672
        %s674 = smul.addr %s673, 8
        %s675 = scalar_lea.vmem %s5, %s674
      $region60: #{tpu_custom_call.1} parent=51 // pred_fallthru
        _
      // Predicated region
      $region61: #{tpu_custom_call.1} parent=51 // pred_check
        %p676 = pneg %p216
      $region62: #{tpu_custom_call.1} parent=51 // pred_check_branch
        %678 = sbr.rel (%p676) target = $region64
      $region63: #{tpu_custom_call.1} parent=51 // pred_region
        %p679 = scmp.lt.s32.totalorder %s26, 1
        %s680 = scalar_select %p679, %s26, 1
        %p681 = scmp.lt.s32.totalorder %s28, 3
        %s682 = scalar_select %p681, %s28, 3
        %p683 = scmp.lt.s32.totalorder %s27, 1
        %s684 = scalar_select %p683, %s27, 1
        %s685 = smul.addr %s682, 2
        %s686 = sadd.s32 %s684, %s685
        %s687 = smul.addr %s680, 8
        %s688 = sadd.s32 %s686, %s687
        %s689 = smul.addr %s688, 8
        %s690 = scalar_lea.vmem %s6, %s689
      $region64: #{tpu_custom_call.1} parent=51 // pred_fallthru
        _
    $region52: #{tpu_custom_call.1} parent=5 // pred_fallthru
      _
  $region6: #{tpu_custom_call.1} parent=0 // loop_footer
    %s17 = sadd.s32 1, %s13
  $region7: #{tpu_custom_call.1} parent=0 // loop_footer_branch
    %12 = sbr.rel target = $region3
  $region8: #{tpu_custom_call.1} parent=0 // loop_exit
    _

</llo_original>
